<compile_context>
chip_gen: v6e
topology: v6e:2x2x1
jax: 0.10.0
libtpu: 0.0.40
codegen_flags: <defaults>
</compile_context>

<pallas_src>
import functools

import jax
import jax.numpy as jnp
from jax.experimental import pallas as pl
from jax.experimental.pallas import tpu as pltpu

n_embd = 32
vocab_size = 65            # stand-in for len(sorted(set(text))) (tiny-shakespeare)
V_PAD = 128                # lane-dense padded vocab dimension
NEG_INF = -1.0e30          # fill for padded vocab columns (finite: avoids 0*inf NaN)


# ----------------------------- kernels -------------------------------------- #

def _logits_kernel(idx_ref, table_ref, logits_ref):
    # idx_ref:    (TILE_N, 1)      int32  token ids for this row tile
    # table_ref:  (V_PAD, V_PAD)   f32    pre-fused bigram table (resident)
    # logits_ref: (TILE_N, V_PAD)  f32    lane-dense logits output
    tile_n = idx_ref.shape[0]
    vpad = table_ref.shape[1]
    cols = jax.lax.broadcasted_iota(jnp.int32, (tile_n, vpad), 1)
    onehot = (cols == idx_ref[...]).astype(jnp.float32)
    # Embedding lookup + lm_head fused into one MXU matmul against the table.
    logits_ref[...] = jnp.dot(onehot, table_ref[...],
                              preferred_element_type=jnp.float32)


def _loss_kernel(tok_ref, table_ref, *out_refs, n_valid, write_logits):
    # tok_ref:   (TILE_N, 2)      int32  [:,0]=token ids, [:,1]=targets
    # table_ref: (V_PAD, V_PAD)   f32    pre-fused bigram table (resident)
    # out_refs:  [(TILE_N, V_PAD) f32 logits,]  (1,1,1) f32 per-tile loss sum
    i = pl.program_id(0)
    tile_n = tok_ref.shape[0]
    vpad = table_ref.shape[1]

    tok = tok_ref[...]                        # (TILE_N, 2)
    idx_col = tok[:, 0:1]                     # (TILE_N, 1)
    tgt_col = tok[:, 1:2]                     # (TILE_N, 1)

    cols = jax.lax.broadcasted_iota(jnp.int32, (tile_n, vpad), 1)
    onehot = (cols == idx_col).astype(jnp.float32)
    logits = jnp.dot(onehot, table_ref[...], preferred_element_type=jnp.float32)

    if write_logits:
        logits_ref, loss_ref = out_refs
        logits_ref[...] = logits              # unmasked full-lane 128-wide store
    else:
        (loss_ref,) = out_refs                # loss-only path: no logits HBM traffic

    # Numerically stable log-sum-exp; padded columns are -1e30 -> exp() == 0,
    # so they do not contribute.
    m = jnp.max(logits, axis=-1, keepdims=True)                    # (TILE_N, 1)
    lse = m + jnp.log(jnp.sum(jnp.exp(logits - m), axis=-1, keepdims=True))
    tgt_onehot = (cols == tgt_col).astype(jnp.float32)
    picked = jnp.sum(tgt_onehot * logits, axis=-1, keepdims=True)  # (TILE_N, 1)

    # Mask rows past the true N (N was padded up to a multiple of TILE_N).
    row = i * tile_n + jax.lax.broadcasted_iota(jnp.int32, (tile_n, 1), 0)
    valid = (row < n_valid).astype(jnp.float32)

    # Per-tile partial sum (independent per grid step -> "parallel" axis).
    partial = jnp.sum((lse - picked) * valid, keepdims=True)       # (1, 1)
    loss_ref[...] = partial.reshape(1, 1, 1)


# ----------------------------- wrappers ------------------------------------- #

def _row_tile(n):
    # One tile (rounded to a sublane multiple) at small sizes; 2048 rows at
    # scale (per-tile VMEM ~4 MiB double-buffered: fits every generation's
    # default scoped-VMEM budget, no vmem_limit_bytes override needed).
    if n <= 2048:
        return max(8, ((n + 7) // 8) * 8)
    return 2048


@functools.partial(jax.jit, static_argnames=("tile_n",))
def _logits_call(idx_pad, table, *, tile_n):
    n_pad = idx_pad.shape[0]
    grid = (n_pad // tile_n,)
    return pl.pallas_call(
        _logits_kernel,
        out_shape=jax.ShapeDtypeStruct((n_pad, V_PAD), jnp.float32),
        grid_spec=pltpu.PrefetchScalarGridSpec(
            num_scalar_prefetch=0,
            grid=grid,
            in_specs=[
                pl.BlockSpec((tile_n, 1), lambda i: (i, 0)),       # idx rows
                pl.BlockSpec((V_PAD, V_PAD), lambda i: (0, 0)),    # table (resident)
            ],
            out_specs=pl.BlockSpec((tile_n, V_PAD), lambda i: (i, 0)),
        ),
        compiler_params=pltpu.CompilerParams(
            dimension_semantics=("parallel",)),
    )(idx_pad, table)


@functools.partial(jax.jit,
                   static_argnames=("n_valid", "tile_n", "write_logits"))
def _loss_call(tok_pad, table, *, n_valid, tile_n, write_logits):
    n_pad = tok_pad.shape[0]
    num_tiles = n_pad // tile_n
    grid = (num_tiles,)
    kernel = functools.partial(_loss_kernel, n_valid=n_valid,
                               write_logits=write_logits)

    loss_shape = jax.ShapeDtypeStruct((num_tiles, 1, 1), jnp.float32)
    loss_spec = pl.BlockSpec((1, 1, 1), lambda i: (i, 0, 0))
    if write_logits:
        out_shape = (jax.ShapeDtypeStruct((n_pad, V_PAD), jnp.float32),
                     loss_shape)
        out_specs = [pl.BlockSpec((tile_n, V_PAD), lambda i: (i, 0)),
                     loss_spec]
    else:
        out_shape = loss_shape
        out_specs = loss_spec

    outs = pl.pallas_call(
        kernel,
        out_shape=out_shape,
        grid_spec=pltpu.PrefetchScalarGridSpec(
            num_scalar_prefetch=0,
            grid=grid,
            in_specs=[
                pl.BlockSpec((tile_n, 2), lambda i: (i, 0)),       # packed idx/tgt
                pl.BlockSpec((V_PAD, V_PAD), lambda i: (0, 0)),    # table (resident)
            ],
            out_specs=out_specs,
        ),
        compiler_params=pltpu.CompilerParams(
            dimension_semantics=("parallel",)),   # independent per-tile outputs
    )(tok_pad, table)

    if write_logits:
        logits_pad, partials = outs
    else:
        logits_pad, partials = None, outs

    loss = jnp.sum(partials) * (1.0 / n_valid)
    return logits_pad, loss


class BigramLanguageModelPallas:
    """JAX/Pallas port of BigramLangaugeModel.forward."""

    def __init__(self, key):
        k_emb, k_w, k_b = jax.random.split(key, 3)
        # Shapes match nn.Embedding(vocab_size, n_embd) / nn.Linear(n_embd, vocab_size).
        self.token_embedding_table = jax.random.normal(
            k_emb, (vocab_size, n_embd), dtype=jnp.float32)
        bound = 1.0 / float(n_embd) ** 0.5
        self.lm_head_w = jax.random.uniform(
            k_w, (vocab_size, n_embd), minval=-bound, maxval=bound, dtype=jnp.float32)
        self.lm_head_b = jax.random.uniform(
            k_b, (vocab_size,), minval=-bound, maxval=bound, dtype=jnp.float32)

        # Pre-fuse static params into one bigram table: logits[i] = (E @ W.T + b)[idx[i]].
        # Pad to (128, 128): pad rows are never selected; pad columns = -1e30 so the
        # in-kernel softmax/LSE ignores them and the wrapper slices them off.
        table = (self.token_embedding_table @ self.lm_head_w.T
                 + self.lm_head_b[None, :])                              # (V, V) f32
        table_pad = jnp.full((V_PAD, V_PAD), NEG_INF, dtype=jnp.float32)
        self.table_padded = table_pad.at[:vocab_size, :vocab_size].set(table)

    def _pad_rows(self, arr2d, n, n_pad):
        if n_pad != n:
            arr2d = jnp.pad(arr2d, ((0, n_pad - n), (0, 0)))
        return arr2d

    def forward(self, idx, target=None):
        B, T = idx.shape
        n = B * T
        tile_n = _row_tile(n)
        n_pad = ((n + tile_n - 1) // tile_n) * tile_n
        idx_flat = idx.reshape(n).astype(jnp.int32)

        if target is None:
            idx_col = self._pad_rows(idx_flat.reshape(n, 1), n, n_pad)
            logits_pad = _logits_call(idx_col, self.table_padded, tile_n=tile_n)
            # NOTE: this slice+reshape is an extra HBM copy; consumers that can
            # accept the padded (n_pad, 128) layout should read logits_pad directly.
            logits = logits_pad[:n, :vocab_size].reshape(B, T, vocab_size)
            return logits, None

        tgt_flat = target.reshape(n).astype(jnp.int32)
        tok = self._pad_rows(jnp.stack([idx_flat, tgt_flat], axis=1), n, n_pad)
        logits_pad, loss = _loss_call(tok, self.table_padded,
                                      n_valid=n, tile_n=tile_n, write_logits=True)
        # PyTorch returns logits.view(B*T, V) when a target is supplied.
        logits = logits_pad[:n, :vocab_size]
        return logits, loss

    def loss(self, idx, target):
        """Loss-only fast path: no logits writeback at all (training-style call)."""
        B, T = idx.shape
        n = B * T
        tile_n = _row_tile(n)
        n_pad = ((n + tile_n - 1) // tile_n) * tile_n
        idx_flat = idx.reshape(n).astype(jnp.int32)
        tgt_flat = target.reshape(n).astype(jnp.int32)
        tok = self._pad_rows(jnp.stack([idx_flat, tgt_flat], axis=1), n, n_pad)
        _, loss = _loss_call(tok, self.table_padded,
                             n_valid=n, tile_n=tile_n, write_logits=False)
        return loss


# ------------------------------- main --------------------------------------- #

if __name__ == "__main__":
    key = jax.random.PRNGKey(0)
    k_model, k_idx, k_tgt = jax.random.split(key, 3)

    model = BigramLanguageModelPallas(k_model)

    B, T = 2, 8
    idx = jax.random.randint(k_idx, (B, T), 0, vocab_size, dtype=jnp.int32)
    target = jax.random.randint(k_tgt, (B, T), 0, vocab_size, dtype=jnp.int32)

    # Forward with loss (fused cross-entropy path, logits + loss).
    logits, loss = model.forward(idx, target)
    jax.block_until_ready(logits)
    jax.block_until_ready(loss)

    # Forward without target (logits-only kernel, loss is None).
    logits2, loss2 = model.forward(idx)
    jax.block_until_ready(logits2)
    assert logits.shape == (B * T, vocab_size)        # PyTorch .view(B*T, V) semantics
    assert logits2.shape == (B, T, vocab_size)
    assert loss2 is None

    # Loss-only fast path (no logits HBM writeback).
    loss_only = model.loss(idx, target)
    jax.block_until_ready(loss_only)

    # Sanity-check against plain JAX reference.
    emb_ref = model.token_embedding_table[idx]                      # (B, T, D)
    logits_ref = emb_ref @ model.lm_head_w.T + model.lm_head_b      # (B, T, V)
    lf = logits_ref.reshape(B * T, vocab_size)
    lse = jax.scipy.special.logsumexp(lf, axis=-1)
    loss_ref = jnp.mean(lse - lf[jnp.arange(B * T), target.reshape(-1)])
    assert jnp.allclose(logits, lf, atol=1e-4, rtol=1e-4)
    assert jnp.allclose(logits2, logits_ref, atol=1e-4, rtol=1e-4)
    assert jnp.allclose(loss, loss_ref, atol=1e-4, rtol=1e-4)
    assert jnp.allclose(loss_only, loss_ref, atol=1e-4, rtol=1e-4)

    print("KERNEL_OK")
</pallas_src>

<mosaic_0001>
module attributes {stable_mosaic.version = 11 : i64} {
  func.func @_loss_kernel(%arg0: i32, %arg1: memref<16x2xi32, #tpu.memory_space<vmem>>, %arg2: memref<128x128xf32, #tpu.memory_space<vmem>>, %arg3: memref<16x128xf32, #tpu.memory_space<vmem>>, %arg4: memref<1x1x1xf32, #tpu.memory_space<vmem>>) attributes {dimension_semantics = [#tpu.dimension_semantics<parallel>], iteration_bounds = array<i64: 1>, scalar_prefetch = 0 : i64, scratch_operands = 0 : i64, tpu.core_type = #tpu.core_type<tc>, window_params = [{transform_indices = @transform_0, window_bounds = array<i64: 16, 2>}, {pipeline_mode = #tpu.pipeline_mode<synchronous>, transform_indices = @transform_1, window_bounds = array<i64: 128, 128>}, {transform_indices = @transform_2, window_bounds = array<i64: 16, 128>}, {transform_indices = @transform_3, window_bounds = array<i64: 1, 1, 1>}]} {
    %c0 = arith.constant 0 : index
    %c0_0 = arith.constant 0 : index
    %0 = vector.load %arg1[%c0, %c0_0] : memref<16x2xi32, #tpu.memory_space<vmem>>, vector<16x2xi32>
    %1 = vector.extract_strided_slice %0 {offsets = [0, 0], sizes = [16, 1], strides = [1, 1]} : vector<16x2xi32> to vector<16x1xi32>
    %2 = vector.extract_strided_slice %0 {offsets = [0, 1], sizes = [16, 1], strides = [1, 1]} : vector<16x2xi32> to vector<16x1xi32>
    %3 = tpu.iota {dimensions = array<i32: 1>} : vector<16x128xi32>
    %4 = vector.broadcast %1 : vector<16x1xi32> to vector<16x128xi32>
    %5 = arith.cmpi eq, %3, %4 : vector<16x128xi32>
    %6 = arith.extui %5 : vector<16x128xi1> to vector<16x128xi32>
    %7 = arith.sitofp %6 : vector<16x128xi32> to vector<16x128xf32>
    %c0_1 = arith.constant 0 : index
    %c0_2 = arith.constant 0 : index
    %8 = vector.load %arg2[%c0_1, %c0_2] : memref<128x128xf32, #tpu.memory_space<vmem>>, vector<128x128xf32>
    %cst = arith.constant dense<0.000000e+00> : vector<16x128xf32>
    %9 = tpu.matmul %7, %8, %cst {dimension_numbers = #tpu.dot_dimension_numbers<[1], [0], [0], [1], [0, 0, 1, 1], [], []>} : vector<16x128xf32>, vector<128x128xf32>, vector<16x128xf32> -> vector<16x128xf32>
    %c0_3 = arith.constant 0 : index
    %c0_4 = arith.constant 0 : index
    %10 = vector.load %arg3[%c0_3, %c0_4] : memref<16x128xf32, #tpu.memory_space<vmem>>, vector<16x128xf32>
    tpu.vector_store %arg3[%c0_3, %c0_4], %9 {strides = array<i32>} : memref<16x128xf32, #tpu.memory_space<vmem>>, vector<16x128xf32>,
    %cst_5 = arith.constant dense<0xFF800000> : vector<16xf32>
    %11 = vector.multi_reduction <maximumf>, %9, %cst_5 [1] : vector<16x128xf32> to vector<16xf32>
    %12 = vector.shape_cast %11 : vector<16xf32> to vector<16x1xf32>
    %13 = vector.broadcast %12 : vector<16x1xf32> to vector<16x128xf32>
    %14 = arith.subf %9, %13 : vector<16x128xf32>
    %15 = math.exp %14 : vector<16x128xf32>
    %cst_6 = arith.constant dense<0.000000e+00> : vector<16xf32>
    %16 = vector.multi_reduction <add>, %15, %cst_6 [1] : vector<16x128xf32> to vector<16xf32>
    %17 = vector.shape_cast %16 : vector<16xf32> to vector<16x1xf32>
    %18 = math.log %17 : vector<16x1xf32>
    %19 = arith.addf %12, %18 : vector<16x1xf32>
    %20 = vector.broadcast %2 : vector<16x1xi32> to vector<16x128xi32>
    %21 = arith.cmpi eq, %3, %20 : vector<16x128xi32>
    %22 = arith.extui %21 : vector<16x128xi1> to vector<16x128xi32>
    %23 = arith.sitofp %22 : vector<16x128xi32> to vector<16x128xf32>
    %24 = arith.mulf %23, %9 : vector<16x128xf32>
    %cst_7 = arith.constant dense<0.000000e+00> : vector<16xf32>
    %25 = vector.multi_reduction <add>, %24, %cst_7 [1] : vector<16x128xf32> to vector<16xf32>
    %26 = vector.shape_cast %25 : vector<16xf32> to vector<16x1xf32>
    %c16_i32 = arith.constant 16 : i32
    %27 = arith.muli %arg0, %c16_i32 : i32
    %28 = tpu.iota {dimensions = array<i32: 0>} : vector<16x1xi32>
    %29 = vector.broadcast %27 : i32 to vector<16x1xi32>
    %30 = arith.addi %29, %28 : vector<16x1xi32>
    %c16_i32_8 = arith.constant 16 : i32
    %31 = vector.broadcast %c16_i32_8 : i32 to vector<16x1xi32>
    %32 = arith.cmpi slt, %30, %31 : vector<16x1xi32>
    %33 = arith.extui %32 : vector<16x1xi1> to vector<16x1xi32>
    %34 = arith.sitofp %33 : vector<16x1xi32> to vector<16x1xf32>
    %35 = arith.subf %19, %26 : vector<16x1xf32>
    %36 = arith.mulf %35, %34 : vector<16x1xf32>
    %37 = vector.shape_cast %36 : vector<16x1xf32> to vector<1x16x1xf32>
    %cst_9 = arith.constant dense<0.000000e+00> : vector<1xf32>
    %38 = vector.multi_reduction <add>, %37, %cst_9 [1, 2] : vector<1x16x1xf32> to vector<1xf32>
    %39 = vector.shape_cast %38 : vector<1xf32> to vector<1x1x1xf32>
    %40 = vector.extract %39[0, 0, 0] : f32 from vector<1x1x1xf32>
    %41 = vector.broadcast %40 : f32 to vector<1x1xf32>
    %42 = vector.shape_cast %41 : vector<1x1xf32> to vector<1x1x1xf32>
    %c0_10 = arith.constant 0 : index
    %c0_11 = arith.constant 0 : index
    %c0_12 = arith.constant 0 : index
    %43 = vector.load %arg4[%c0_10, %c0_11, %c0_12] : memref<1x1x1xf32, #tpu.memory_space<vmem>>, vector<1x1x1xf32>
    tpu.vector_store %arg4[%c0_10, %c0_11, %c0_12], %42 {strides = array<i32>} : memref<1x1x1xf32, #tpu.memory_space<vmem>>, vector<1x1x1xf32>,
    return
  }
  func.func @transform_0(%arg0: i32) -> (i32, i32) {
    %c0_i32 = arith.constant 0 : i32
    %c0_i32_0 = arith.constant 0 : i32
    return %arg0, %c0_i32 : i32, i32
  }
  func.func @transform_1(%arg0: i32) -> (i32, i32) {
    %c0_i32 = arith.constant 0 : i32
    %c0_i32_0 = arith.constant 0 : i32
    %c0_i32_1 = arith.constant 0 : i32
    return %c0_i32, %c0_i32_0 : i32, i32
  }
  func.func @transform_2(%arg0: i32) -> (i32, i32) {
    %c0_i32 = arith.constant 0 : i32
    %c0_i32_0 = arith.constant 0 : i32
    return %arg0, %c0_i32 : i32, i32
  }
  func.func @transform_3(%arg0: i32) -> (i32, i32, i32) {
    %c0_i32 = arith.constant 0 : i32
    %c0_i32_0 = arith.constant 0 : i32
    %c0_i32_1 = arith.constant 0 : i32
    return %arg0, %c0_i32, %c0_i32_0 : i32, i32, i32
  }
}

</mosaic_0001>

<llo_original>
// kernel: _loss_call.1
$region0: #{_loss_call.1}
  #allocation0 [shape = 'u32[]', space=smem, size = 0x4, offset = 0x4, fixed_abs, tag = 'smem constant byte address 0x4 - core index']
  #allocation1 [shape = 'u32[144,128]{1,0:T(1,128)}', space=vmem, size = 0x12000, scoped, tag = 'internal scratch']
  %s0 = inlined_call_operand.vmem [shape: s32[16,2], index: 0, kind: input, shape index: {}]
  %s1 = inlined_call_operand.hbm [shape: f32[128,128], index: 1, kind: input, shape index: {}]
  %s2 = inlined_call_operand.hbm [shape: f32[16,128], index: 2, kind: output, shape index: {0}]
  %s3 = inlined_call_operand.hbm [shape: f32[1,1,1], index: 3, kind: output, shape index: {1}]
  %4 = xla_tuple %s2, %s3
  %s5 = sld [smem:[#allocation0]]
  $region30: #{_loss_call.1} parent=0
    _
  %s7 = ssub.s32 1, %s5
  %s8 = scalar_select 0, %s7, %s5
  $region1: #{_loss_call.1} parent=0
    #allocation2 [shape = 'u8[65536]{0}', space=vmem, size = 0x10000, scoped, tag = 'input window, operand 1, single buffered']
    #allocation3 [shape = 's32[1]{0}', space=sflag, size = 0x4, scoped, tag = 'scoped memory for _loss_call.1']
    #allocation4 [shape = 's32[1]{0}', space=sflag, size = 0x4, scoped, tag = 'scoped memory for _loss_call.1']
    #allocation5 [shape = 'u8[8192]{0}', space=vmem, size = 0x2000, scoped, tag = 'output window, operand 0, single buffered']
    #allocation6 [shape = 'u8[512]{0}', space=vmem, size = 0x400, scoped, tag = 'output window, operand 1, single buffered']
    #allocation7 [shape = 's32[1]{0}', space=sflag, size = 0x4, scoped, tag = 'scoped memory for _loss_call.1']
    %9 = vsyncpa [#allocation3], 0
    %10 = vsyncpa [#allocation4], 0
    %11 = vsyncpa [#allocation7], 0
    // Predicated region
    $region2: #{_loss_call.1} parent=1 // pred_check
      _
    $region3: #{_loss_call.1} parent=1 // pred_check_branch
      %13 = sbr.rel (0) target = $region5
    $region4: #{_loss_call.1} parent=1 // pred_region
      _
    $region5: #{_loss_call.1} parent=1 // pred_fallthru
      _
    // Predicated region
    $region6: #{_loss_call.1} parent=1 // pred_check
      _
    $region7: #{_loss_call.1} parent=1 // pred_check_branch
      %15 = sbr.rel (0) target = $region9
    $region8: #{_loss_call.1} parent=1 // pred_region
      %s17 = ssub.s32 2048, 2048
      %18 = vsyncadd [#allocation3], %s17
      %s19 = sshll.u32 [#allocation2], 4
      %s20 = int_to_ptr.vmem [resolvable:$true] %s19
      %25 = dma.hbm_to_vmem [thread:$0]  %s1, 2048, %s20, [#allocation3], 128, 128, 8
    $region9: #{_loss_call.1} parent=1 // pred_fallthru
      _
    // Predicated region
    $region10: #{_loss_call.1} parent=1 // pred_check
      _
    $region11: #{_loss_call.1} parent=1 // pred_check_branch
      %27 = sbr.rel (0) target = $region13
    $region12: #{_loss_call.1} parent=1 // pred_region
      %28 = dma.done [#allocation3], 2048
    $region13: #{_loss_call.1} parent=1 // pred_fallthru
      _
    %v29 = vld [vmem:[%s0] sm:$0xff]
    %v30 = vld [vmem:[%s0 + $0x8] sm:$0xff]
    %v31 = vlaneseq
    %v32 = vand.u32 %v31, 127
    %33 = vset.pattern.permute.xlu0 0
    %34 = vperm.xlu0 %33, %v29
    %v35 = vpop.permute.xlu0 %34
    %36 = vset.pattern.permute.xlu0 0
    %37 = vperm.xlu0 %36, %v30
    %v38 = vpop.permute.xlu0 %37
    %vm39 = vcmp.eq.s32.totalorder %v32, %v35
    %vm40 = vcmp.eq.s32.totalorder %v32, %v38
    %v41 = vsel %vm39, 1, 0
    %v42 = vsel %vm40, 1, 0
    %v43 = vcvt.s32.f32 %v41
    %v44 = vcvt.s32.f32 %v42
    %v45 = vld [vmem:[#allocation2] sm:$0xff]
    %v46 = vld [vmem:[#allocation2 + $0x8] sm:$0xff]
    %v47 = vld [vmem:[#allocation2 + $0x10] sm:$0xff]
    %v48 = vld [vmem:[#allocation2 + $0x18] sm:$0xff]
    %v49 = vld [vmem:[#allocation2 + $0x20] sm:$0xff]
    %v50 = vld [vmem:[#allocation2 + $0x28] sm:$0xff]
    %v51 = vld [vmem:[#allocation2 + $0x30] sm:$0xff]
    %v52 = vld [vmem:[#allocation2 + $0x38] sm:$0xff]
    %v53 = vld [vmem:[#allocation2 + $0x40] sm:$0xff]
    %v54 = vld [vmem:[#allocation2 + $0x48] sm:$0xff]
    %v55 = vld [vmem:[#allocation2 + $0x50] sm:$0xff]
    %v56 = vld [vmem:[#allocation2 + $0x58] sm:$0xff]
    %v57 = vld [vmem:[#allocation2 + $0x60] sm:$0xff]
    %v58 = vld [vmem:[#allocation2 + $0x68] sm:$0xff]
    %v59 = vld [vmem:[#allocation2 + $0x70] sm:$0xff]
    %v60 = vld [vmem:[#allocation2 + $0x78] sm:$0xff]
    %61 = vmatprep.subr.mxu0 0.0
    %62 = vmatpush1.msra.mxu0 %v60
    %63 = vmatprep.subr.mxu0 0.0
    %64 = vmatpush1.msra.mxu0 %v59
    %65 = vmatprep.subr.mxu0 0.0
    %66 = vmatpush1.msra.mxu0 %v58
    %67 = vmatprep.subr.mxu0 0.0
    %68 = vmatpush1.msra.mxu0 %v57
    %69 = vmatprep.subr.mxu0 0.0
    %70 = vmatpush1.msra.mxu0 %v56
    %71 = vmatprep.subr.mxu0 0.0
    %72 = vmatpush1.msra.mxu0 %v55
    %73 = vmatprep.subr.mxu0 0.0
    %74 = vmatpush1.msra.mxu0 %v54
    %75 = vmatprep.subr.mxu0 0.0
    %76 = vmatpush1.msra.mxu0 %v53
    %77 = vmatprep.subr.mxu0 0.0
    %78 = vmatpush1.msra.mxu0 %v52
    %79 = vmatprep.subr.mxu0 0.0
    %80 = vmatpush1.msra.mxu0 %v51
    %81 = vmatprep.subr.mxu0 0.0
    %82 = vmatpush1.msra.mxu0 %v50
    %83 = vmatprep.subr.mxu0 0.0
    %84 = vmatpush1.msra.mxu0 %v49
    %85 = vmatprep.subr.mxu0 0.0
    %86 = vmatpush1.msra.mxu0 %v48
    %87 = vmatprep.subr.mxu0 0.0
    %88 = vmatpush1.msra.mxu0 %v47
    %89 = vmatprep.subr.mxu0 0.0
    %90 = vmatpush1.msra.mxu0 %v46
    %91 = vmatprep.subr.mxu0 0.0
    %92 = vmatpush1.msra.mxu0 %v45
    %93 = vmatprep.subr.mxu0 0.0
    %94 = vmatpush2.msra.mxu0 0.0
    %95 = vmatprep.subr.mxu0 0.0
    %96 = vmatpush2.msra.mxu0 0.0
    %97 = vmatprep.subr.mxu0 0.0
    %98 = vmatpush2.msra.mxu0 0.0
    %99 = vmatprep.subr.mxu0 0.0
    %100 = vmatpush2.msra.mxu0 0.0
    %101 = vmatprep.subr.mxu0 0.0
    %102 = vmatpush2.msra.mxu0 0.0
    %103 = vmatprep.subr.mxu0 0.0
    %104 = vmatpush2.msra.mxu0 0.0
    %105 = vmatprep.subr.mxu0 0.0
    %106 = vmatpush2.msra.mxu0 0.0
    %107 = vmatprep.subr.mxu0 0.0
    %108 = vmatpush2.msra.mxu0 0.0
    %109 = vmatprep.subr.mxu0 0.0
    %110 = vmatpush2.msra.mxu0 0.0
    %111 = vmatprep.subr.mxu0 0.0
    %112 = vmatpush2.msra.mxu0 0.0
    %113 = vmatprep.subr.mxu0 0.0
    %114 = vmatpush2.msra.mxu0 0.0
    %115 = vmatprep.subr.mxu0 0.0
    %116 = vmatpush2.msra.mxu0 0.0
    %117 = vmatprep.subr.mxu0 0.0
    %118 = vmatpush2.msra.mxu0 0.0
    %119 = vmatprep.subr.mxu0 0.0
    %120 = vmatpush2.msra.mxu0 0.0
    %121 = vmatprep.subr.mxu0 0.0
    %122 = vmatpush2.msra.mxu0 0.0
    %123 = vmatprep.subr.mxu0 0.0
    %124 = vmatpush2.msra.mxu0 0.0
    %125 = vmatprep.mubr.f32.mxu0 0.0
    %126 = vmatmul.mubr.f32.gmra.mxu0 %v43
    %v127 = vpop.f32.mrf.mxu0
    %v128 = vadd.f32 0.0, %v127
    %v129 = vpop.f32.mrf.mxu0
    %130 = vmatprep.mubr.f32.mxu0 0.0
    %131 = vmatmul.mubr.f32.gmra.mxu0 %v44
    %v132 = vpop.f32.mrf.mxu0
    %v133 = vadd.f32 0.0, %v132
    %v134 = vpop.f32.mrf.mxu0
    %135 = vdwg.mxu0
    %136 = vst [vmem:[#allocation5] sm:$0xff] %v128
    %137 = vst [vmem:[#allocation5 + $0x8] sm:$0xff] %v133
    %138 = vmax.xlane.f32.xlu0 %v128
    %v139 = vpop.xlane.xlu0 %138
    %140 = vmax.xlane.f32.xlu0 %v133
    %v141 = vpop.xlane.xlu0 %140
    %v142 = vsub.f32 %v128, %v139
    %v143 = vsub.f32 %v133, %v141
    %v144 = vmul.f32 %v142, 1.442695
    %v145 = vpow.pop %v144
    %v146 = vmul.f32 %v143, 1.442695
    %v147 = vpow.pop %v146
    %148 = vadd.xlane.f32.xlu0 %v145
    %v149 = vpop.xlane.xlu0 %148
    %150 = vadd.xlane.f32.xlu0 %v147
    %v151 = vpop.xlane.xlu0 %150
    %v152 = vlog2.pop %v149
    %v153 = vmul.f32 %v152, 0.6931472
    %v154 = vlog2.pop %v151
    %v155 = vmul.f32 %v154, 0.6931472
    %v156 = vadd.f32 %v139, %v153
    %v157 = vadd.f32 %v141, %v155
    %158 = vset.pattern.permute.xlu0 1
    %159 = vperm.xlu0 %158, %v29
    %v160 = vpop.permute.xlu0 %159
    %161 = vset.pattern.permute.xlu0 1
    %162 = vperm.xlu0 %161, %v30
    %v163 = vpop.permute.xlu0 %162
    %vm164 = vcmp.eq.s32.totalorder %v32, %v160
    %vm165 = vcmp.eq.s32.totalorder %v32, %v163
    %v166 = vsel %vm164, 1, 0
    %v167 = vsel %vm165, 1, 0
    %v168 = vcvt.s32.f32 %v166
    %v169 = vcvt.s32.f32 %v167
    %v170 = vmul.f32 %v168, %v128
    %v171 = vmul.f32 %v169, %v133
    %172 = vadd.xlane.f32.xlu0 %v170
    %v173 = vpop.xlane.xlu0 %172
    %174 = vadd.xlane.f32.xlu0 %v171
    %v175 = vpop.xlane.xlu0 %174
    %s176 = smul.u32 0, 16
    %v177 = vlaneseq
    %v178 = vshrl.u32 %v177, 7
    %v179 = vadd.s32 %v178, 8
    %v180 = vstv %s176
    %v181 = vadd.s32 %v180, %v178
    %v182 = vadd.s32 %v180, %v179
    %vm183 = vcmp.lt.s32.totalorder %v181, 16
    %vm184 = vcmp.lt.s32.totalorder %v182, 16
    %v185 = vsel %vm183, 1, 0
    %v186 = vsel %vm184, 1, 0
    %v187 = vcvt.s32.f32 %v185
    %v188 = vcvt.s32.f32 %v186
    %v189 = vsub.f32 %v156, %v173
    %v190 = vsub.f32 %v157, %v175
    %v191 = vmul.f32 %v189, %v187
    %v192 = vmul.f32 %v190, %v188
    %vm193 = vcmask 7168
    %v194 = vsel %vm193, %v191, 0.0
    %v195 = vsel %vm193, %v192, 0.0
    %v196 = vadd.f32 %v194, %v195
    %197 = vadd.xlane.f32.xlu0 %v196
    %v198 = vpop.xlane.xlu0 %197
    %v199 = vrot.slane %v198, 4
    %v200 = vadd.f32 %v198, %v199
    %v201 = vrot.slane %v200, 2
    %v202 = vadd.f32 %v200, %v201
    %v203 = vrot.slane %v202, 1
    %v204 = vadd.f32 %v202, %v203
    %s205 = vtos %v204
    %v206 = vstv %s205
    %vm207 = vcmask 0
    %208 = vst.msk [vmem:[#allocation6] sm:$0x1] %vm207, %v206
    // Predicated region
    $region14: #{_loss_call.1} parent=1 // pred_check
      _
    $region15: #{_loss_call.1} parent=1 // pred_check_branch
      %210 = sbr.rel (0) target = $region17
    $region16: #{_loss_call.1} parent=1 // pred_region
      %s212 = ssub.s32 256, 256
      %213 = vsyncadd [#allocation4], %s212
      %s214 = sshll.u32 [#allocation5], 4
      %s215 = int_to_ptr.vmem [resolvable:$true] %s214
      %220 = dma.vmem_to_hbm [thread:$0]  %s215, 256, %s2, [#allocation4], 128, 128, 8
    $region17: #{_loss_call.1} parent=1 // pred_fallthru
      _
    // Predicated region
    $region18: #{_loss_call.1} parent=1 // pred_check
      _
    $region19: #{_loss_call.1} parent=1 // pred_check_branch
      %222 = sbr.rel (0) target = $region21
    $region20: #{_loss_call.1} parent=1 // pred_region
      %s224 = ssub.s32 16, 16
      %225 = vsyncadd [#allocation7], %s224
      %s227 = sshll.u32 [#allocation6], 4
      %s228 = int_to_ptr.vmem [resolvable:$true] %s227
      %230 = dma.vmem_to_hbm [thread:$0]  %s228, 16, %s3, [#allocation7]
    $region21: #{_loss_call.1} parent=1 // pred_fallthru
      _
    // Predicated region
    $region22: #{_loss_call.1} parent=1 // pred_check
      _
    $region23: #{_loss_call.1} parent=1 // pred_check_branch
      %232 = sbr.rel (0) target = $region25
    $region24: #{_loss_call.1} parent=1 // pred_region
      %233 = dma.done [#allocation4], 256
    $region25: #{_loss_call.1} parent=1 // pred_fallthru
      _
    // Predicated region
    $region26: #{_loss_call.1} parent=1 // pred_check
      _
    $region27: #{_loss_call.1} parent=1 // pred_check_branch
      %235 = sbr.rel (0) target = $region29
    $region28: #{_loss_call.1} parent=1 // pred_region
      %236 = dma.done [#allocation7], 16
    $region29: #{_loss_call.1} parent=1 // pred_fallthru
      _
    %237 = vsyncpa [#allocation3], 1
    %238 = vsyncpa [#allocation4], 1
    %239 = vsyncpa [#allocation7], 1

</llo_original>
